<compile_context>
chip_gen: v7x
topology: tpu7x:2x2x1
jax: 0.10.0
libtpu: 0.0.40
codegen_flags: <defaults>
</compile_context>

<pallas_src>
import functools

import jax
import jax.numpy as jnp
from jax.experimental import pallas as pl
from jax.experimental.pallas import tpu as pltpu


def _round_up(x, mult):
    return ((x + mult - 1) // mult) * mult


def _proj_cls_row_loss_kernel(cos_ref, label_ref, out_ref,
                              m_scr, l_scr, t_scr,
                              *, s, m, num_classes, c_tile):
    c = pl.program_id(1)

    # ---- init accumulators at the first class tile ----
    @pl.when(c == 0)
    def _():
        m_scr[...] = jnp.full_like(m_scr, -jnp.inf)
        l_scr[...] = jnp.zeros_like(l_scr)
        t_scr[...] = jnp.zeros_like(t_scr)

    cos = cos_ref[...].astype(jnp.float32)          # (Bt, Ct) cast on load (bf16 ok)
    label = label_ref[...]                          # (Bt, 1) int32
    bt, ct = cos.shape

    # sin_sim = 1 - sqrt(1 - clamp(cos, -0.99, 0.99)^2)   (sqrt -> EUP slot)
    clamped = jnp.clip(cos, -0.99, 0.99)
    sin_sim = 1.0 - jnp.sqrt(1.0 - clamped * clamped)

    # global class index for this tile; fused one-hot via compare + where
    col = c * c_tile + jax.lax.broadcasted_iota(jnp.int32, (bt, ct), 1)
    is_tgt = col == label                           # broadcasts (Bt,1) over lanes

    # target column uses raw cos (PyTorch semantics), others use sin_sim
    logits = s * jnp.where(is_tgt, cos - m, sin_sim)

    if (num_classes % c_tile) != 0:                 # static: only if padding exists
        logits = jnp.where(col < num_classes, logits, -jnp.inf)

    # ---- online softmax update (all reductions kept (Bt, 1) keepdims) ----
    m_prev = m_scr[...]
    m_new = jnp.maximum(m_prev, jnp.max(logits, axis=1, keepdims=True))
    alpha = jnp.exp(m_prev - m_new)                 # exp(-inf) = 0 on first tile
    l_scr[...] = alpha * l_scr[...] + jnp.sum(jnp.exp(logits - m_new),
                                              axis=1, keepdims=True)
    m_scr[...] = m_new
    t_scr[...] = t_scr[...] + jnp.sum(jnp.where(is_tgt, logits, 0.0),
                                      axis=1, keepdims=True)

    # ---- finalize per-row loss on the last class tile ----
    @pl.when(c == pl.num_programs(1) - 1)
    def _():
        out_ref[...] = m_scr[...] + jnp.log(l_scr[...]) - t_scr[...]


def proj_cls_loss(cos_sim, fn, wn, label, *, s=30.0, m=0.3,
                  b_tile=256, c_tile=2048):
    """CosFace projection-classification loss.

    cos_sim: (B, C) any float dtype (kept native; cast to f32 in-kernel)
    fn: (B,) feature norms, wn: (C,) weight norms, label: (B,) int
    Tile defaults fit comfortably in v7x's smaller VMEM; on v6e/v5e larger
    c_tile (e.g. 8192) gets closer to HBM roofline.
    """
    B, C = cos_sim.shape

    # (8, 128)-aligned tiles, clamped to the (padded) problem size.
    bt = min(b_tile, _round_up(B, 8))
    ct = min(c_tile, _round_up(C, 128))
    b_pad = _round_up(B, bt)
    c_pad = _round_up(C, ct)

    cos_p = cos_sim
    if (b_pad, c_pad) != (B, C):
        cos_p = jnp.pad(cos_sim, ((0, b_pad - B), (0, c_pad - C)))
    label_p = label.reshape(B, 1).astype(jnp.int32)
    if b_pad != B:
        label_p = jnp.pad(label_p, ((0, b_pad - B), (0, 0)))

    kernel = functools.partial(_proj_cls_row_loss_kernel,
                               s=float(s), m=float(m),
                               num_classes=C, c_tile=ct)

    row_loss = pl.pallas_call(
        kernel,
        out_shape=jax.ShapeDtypeStruct((b_pad, 1), jnp.float32),
        grid_spec=pltpu.PrefetchScalarGridSpec(
            num_scalar_prefetch=0,
            grid=(b_pad // bt, c_pad // ct),
            in_specs=[
                pl.BlockSpec((bt, ct), lambda b, c: (b, c)),   # cos_sim tiles
                pl.BlockSpec((bt, 1), lambda b, c: (b, 0)),    # labels per batch tile
            ],
            out_specs=pl.BlockSpec((bt, 1), lambda b, c: (b, 0)),
            scratch_shapes=[pltpu.VMEM((bt, 1), jnp.float32)] * 3,  # m, l, tgt
        ),
        compiler_params=pltpu.CompilerParams(
            dimension_semantics=("parallel", "arbitrary")),
    )(cos_p, label_p)

    ce = jnp.mean(row_loss[:B, 0])

    # O(B + C) regularizers hoisted out of the kernel (computed once, trivially cheap).
    wn32 = wn.astype(jnp.float32)
    fn32 = fn.astype(jnp.float32)
    reg = 0.01 * jnp.mean((wn32 - 10.0) ** 2) + 0.01 * jnp.mean((fn32 - 40.0) ** 2)
    return ce + reg


def _proj_cls_loss_ref(cos_sim, fn, wn, label, *, s=30.0, m=0.3):
    # pure-JAX reference mirroring the PyTorch forward
    cos = cos_sim.astype(jnp.float32)
    sin_sim = 1.0 - jnp.sqrt(1.0 - jnp.clip(cos, -0.99, 0.99) ** 2)
    one_hot = jax.nn.one_hot(label, cos.shape[1], dtype=jnp.float32)
    similarity = one_hot * cos + (1.0 - one_hot) * sin_sim
    logits = s * (similarity - one_hot * m)
    logp = jax.nn.log_softmax(logits, axis=1)
    ce = -jnp.mean(jnp.sum(one_hot * logp, axis=1))
    return (ce
            + 0.01 * jnp.mean((wn.astype(jnp.float32) - 10.0) ** 2)
            + 0.01 * jnp.mean((fn.astype(jnp.float32) - 40.0) ** 2))


if __name__ == "__main__":
    B, C = 16, 200  # small demo; C deliberately not a multiple of 128 to test masking

    key = jax.random.PRNGKey(0)
    k1, k2, k3, k4 = jax.random.split(key, 4)
    cos_sim = jax.random.uniform(k1, (B, C), jnp.float32, minval=-1.0, maxval=1.0)
    label = jax.random.randint(k2, (B,), 0, C, dtype=jnp.int32)
    fn = 40.0 + jax.random.normal(k3, (B,), jnp.float32)   # feature norms per sample
    wn = 10.0 + jax.random.normal(k4, (C,), jnp.float32)   # weight norms per class

    # Small tiles -> exercises the (batch x class) grid, online softmax across class
    # tiles, and the padded-lane mask.
    loss = proj_cls_loss(cos_sim, fn, wn, label, s=30.0, m=0.3, b_tile=8, c_tile=128)
    loss = jax.block_until_ready(loss)
    ref = _proj_cls_loss_ref(cos_sim, fn, wn, label, s=30.0, m=0.3)
    assert jnp.allclose(loss, ref, rtol=1e-5, atol=1e-5), (loss, ref)

    # bf16 cos_sim path: input stays bf16 in HBM, cast to f32 inside the kernel.
    cos_bf16 = cos_sim.astype(jnp.bfloat16)
    loss_bf = jax.block_until_ready(proj_cls_loss(cos_bf16, fn, wn, label, s=30.0, m=0.3))
    ref_bf = _proj_cls_loss_ref(cos_bf16, fn, wn, label, s=30.0, m=0.3)
    assert jnp.allclose(loss_bf, ref_bf, rtol=1e-5, atol=1e-5), (loss_bf, ref_bf)

    print("KERNEL_OK")
</pallas_src>

<mosaic_0001>
module attributes {stable_mosaic.version = 11 : i64} {
  func.func @_proj_cls_row_loss_kernel(%arg0: i32, %arg1: i32, %arg2: memref<8x128xf32, #tpu.memory_space<vmem>>, %arg3: memref<8x1xi32, #tpu.memory_space<vmem>>, %arg4: memref<8x1xf32, #tpu.memory_space<vmem>>, %arg5: memref<8x1xf32, #tpu.memory_space<vmem>>, %arg6: memref<8x1xf32, #tpu.memory_space<vmem>>, %arg7: memref<8x1xf32, #tpu.memory_space<vmem>>) attributes {dimension_semantics = [#tpu.dimension_semantics<parallel>, #tpu.dimension_semantics<arbitrary>], iteration_bounds = array<i64: 2, 2>, scalar_prefetch = 0 : i64, scratch_operands = 3 : i64, tpu.core_type = #tpu.core_type<tc>, window_params = [{transform_indices = @transform_0, window_bounds = array<i64: 8, 128>}, {transform_indices = @transform_1, window_bounds = array<i64: 8, 1>}, {transform_indices = @transform_2, window_bounds = array<i64: 8, 1>}]} {
    %c0_i32 = arith.constant 0 : i32
    %0 = arith.cmpi eq, %arg1, %c0_i32 : i32
    %1 = arith.extui %0 : i1 to i32
    %c0_i32_0 = arith.constant 0 : i32
    %2 = arith.cmpi ne, %1, %c0_i32_0 : i32
    scf.if %2 {
      %cst_27 = arith.constant 0xFF800000 : f32
      %56 = vector.broadcast %cst_27 : f32 to vector<8x1xf32>
      %c0_28 = arith.constant 0 : index
      %c0_29 = arith.constant 0 : index
      %57 = vector.load %arg5[%c0_28, %c0_29] : memref<8x1xf32, #tpu.memory_space<vmem>>, vector<8x1xf32>
      tpu.vector_store %arg5[%c0_28, %c0_29], %56 {strides = array<i32>} : memref<8x1xf32, #tpu.memory_space<vmem>>, vector<8x1xf32>,
      %cst_30 = arith.constant 0.000000e+00 : f32
      %58 = vector.broadcast %cst_30 : f32 to vector<8x1xf32>
      %c0_31 = arith.constant 0 : index
      %c0_32 = arith.constant 0 : index
      %59 = vector.load %arg6[%c0_31, %c0_32] : memref<8x1xf32, #tpu.memory_space<vmem>>, vector<8x1xf32>
      tpu.vector_store %arg6[%c0_31, %c0_32], %58 {strides = array<i32>} : memref<8x1xf32, #tpu.memory_space<vmem>>, vector<8x1xf32>,
      %cst_33 = arith.constant 0.000000e+00 : f32
      %60 = vector.broadcast %cst_33 : f32 to vector<8x1xf32>
      %c0_34 = arith.constant 0 : index
      %c0_35 = arith.constant 0 : index
      %61 = vector.load %arg7[%c0_34, %c0_35] : memref<8x1xf32, #tpu.memory_space<vmem>>, vector<8x1xf32>
      tpu.vector_store %arg7[%c0_34, %c0_35], %60 {strides = array<i32>} : memref<8x1xf32, #tpu.memory_space<vmem>>, vector<8x1xf32>,
    } else {
    }
    %c0 = arith.constant 0 : index
    %c0_1 = arith.constant 0 : index
    %3 = vector.load %arg2[%c0, %c0_1] : memref<8x128xf32, #tpu.memory_space<vmem>>, vector<8x128xf32>
    %c0_2 = arith.constant 0 : index
    %c0_3 = arith.constant 0 : index
    %4 = vector.load %arg3[%c0_2, %c0_3] : memref<8x1xi32, #tpu.memory_space<vmem>>, vector<8x1xi32>
    %cst = arith.constant -9.900000e-01 : f32
    %cst_4 = arith.constant 9.900000e-01 : f32
    %5 = vector.broadcast %cst : f32 to vector<8x128xf32>
    %6 = arith.maximumf %5, %3 : vector<8x128xf32>
    %7 = vector.broadcast %cst_4 : f32 to vector<8x128xf32>
    %8 = arith.minimumf %7, %6 : vector<8x128xf32>
    %9 = arith.mulf %8, %8 : vector<8x128xf32>
    %cst_5 = arith.constant 1.000000e+00 : f32
    %10 = vector.broadcast %cst_5 : f32 to vector<8x128xf32>
    %11 = arith.subf %10, %9 : vector<8x128xf32>
    %12 = math.sqrt %11 : vector<8x128xf32>
    %cst_6 = arith.constant 1.000000e+00 : f32
    %13 = vector.broadcast %cst_6 : f32 to vector<8x128xf32>
    %14 = arith.subf %13, %12 : vector<8x128xf32>
    %c128_i32 = arith.constant 128 : i32
    %15 = arith.muli %arg1, %c128_i32 : i32
    %16 = tpu.iota {dimensions = array<i32: 1>} : vector<8x128xi32>
    %17 = vector.broadcast %15 : i32 to vector<8x128xi32>
    %18 = arith.addi %17, %16 : vector<8x128xi32>
    %19 = vector.broadcast %4 : vector<8x1xi32> to vector<8x128xi32>
    %20 = arith.cmpi eq, %18, %19 : vector<8x128xi32>
    %cst_7 = arith.constant 3.000000e-01 : f32
    %21 = vector.broadcast %cst_7 : f32 to vector<8x128xf32>
    %22 = arith.subf %3, %21 : vector<8x128xf32>
    %23 = arith.select %20, %22, %14 : vector<8x128xi1>, vector<8x128xf32>
    %cst_8 = arith.constant 3.000000e+01 : f32
    %24 = vector.broadcast %cst_8 : f32 to vector<8x128xf32>
    %25 = arith.mulf %24, %23 : vector<8x128xf32>
    %c200_i32 = arith.constant 200 : i32
    %26 = vector.broadcast %c200_i32 : i32 to vector<8x128xi32>
    %27 = arith.cmpi slt, %18, %26 : vector<8x128xi32>
    %cst_9 = arith.constant 0xFF800000 : f32
    %28 = vector.broadcast %cst_9 : f32 to vector<8x128xf32>
    %29 = arith.select %27, %25, %28 : vector<8x128xi1>, vector<8x128xf32>
    %c0_10 = arith.constant 0 : index
    %c0_11 = arith.constant 0 : index
    %30 = vector.load %arg5[%c0_10, %c0_11] : memref<8x1xf32, #tpu.memory_space<vmem>>, vector<8x1xf32>
    %cst_12 = arith.constant dense<0xFF800000> : vector<8xf32>
    %31 = vector.multi_reduction <maximumf>, %29, %cst_12 [1] : vector<8x128xf32> to vector<8xf32>
    %32 = vector.shape_cast %31 : vector<8xf32> to vector<8x1xf32>
    %33 = arith.maximumf %30, %32 : vector<8x1xf32>
    %34 = arith.subf %30, %33 : vector<8x1xf32>
    %35 = math.exp %34 : vector<8x1xf32>
    %c0_13 = arith.constant 0 : index
    %c0_14 = arith.constant 0 : index
    %36 = vector.load %arg6[%c0_13, %c0_14] : memref<8x1xf32, #tpu.memory_space<vmem>>, vector<8x1xf32>
    %37 = arith.mulf %35, %36 : vector<8x1xf32>
    %38 = vector.broadcast %33 : vector<8x1xf32> to vector<8x128xf32>
    %39 = arith.subf %29, %38 : vector<8x128xf32>
    %40 = math.exp %39 : vector<8x128xf32>
    %cst_15 = arith.constant dense<0.000000e+00> : vector<8xf32>
    %41 = vector.multi_reduction <add>, %40, %cst_15 [1] : vector<8x128xf32> to vector<8xf32>
    %42 = vector.shape_cast %41 : vector<8xf32> to vector<8x1xf32>
    %43 = arith.addf %37, %42 : vector<8x1xf32>
    %c0_16 = arith.constant 0 : index
    %c0_17 = arith.constant 0 : index
    %44 = vector.load %arg6[%c0_16, %c0_17] : memref<8x1xf32, #tpu.memory_space<vmem>>, vector<8x1xf32>
    tpu.vector_store %arg6[%c0_16, %c0_17], %43 {strides = array<i32>} : memref<8x1xf32, #tpu.memory_space<vmem>>, vector<8x1xf32>,
    %c0_18 = arith.constant 0 : index
    %c0_19 = arith.constant 0 : index
    %45 = vector.load %arg5[%c0_18, %c0_19] : memref<8x1xf32, #tpu.memory_space<vmem>>, vector<8x1xf32>
    tpu.vector_store %arg5[%c0_18, %c0_19], %33 {strides = array<i32>} : memref<8x1xf32, #tpu.memory_space<vmem>>, vector<8x1xf32>,
    %c0_20 = arith.constant 0 : index
    %c0_21 = arith.constant 0 : index
    %46 = vector.load %arg7[%c0_20, %c0_21] : memref<8x1xf32, #tpu.memory_space<vmem>>, vector<8x1xf32>
    %cst_22 = arith.constant 0.000000e+00 : f32
    %47 = vector.broadcast %cst_22 : f32 to vector<8x128xf32>
    %48 = arith.select %20, %29, %47 : vector<8x128xi1>, vector<8x128xf32>
    %cst_23 = arith.constant dense<0.000000e+00> : vector<8xf32>
    %49 = vector.multi_reduction <add>, %48, %cst_23 [1] : vector<8x128xf32> to vector<8xf32>
    %50 = vector.shape_cast %49 : vector<8xf32> to vector<8x1xf32>
    %51 = arith.addf %46, %50 : vector<8x1xf32>
    %c0_24 = arith.constant 0 : index
    %c0_25 = arith.constant 0 : index
    %52 = vector.load %arg7[%c0_24, %c0_25] : memref<8x1xf32, #tpu.memory_space<vmem>>, vector<8x1xf32>
    tpu.vector_store %arg7[%c0_24, %c0_25], %51 {strides = array<i32>} : memref<8x1xf32, #tpu.memory_space<vmem>>, vector<8x1xf32>,
    %c1_i32 = arith.constant 1 : i32
    %53 = arith.cmpi eq, %arg1, %c1_i32 : i32
    %54 = arith.extui %53 : i1 to i32
    %c0_i32_26 = arith.constant 0 : i32
    %55 = arith.cmpi ne, %54, %c0_i32_26 : i32
    scf.if %55 {
      %c0_27 = arith.constant 0 : index
      %c0_28 = arith.constant 0 : index
      %56 = vector.load %arg5[%c0_27, %c0_28] : memref<8x1xf32, #tpu.memory_space<vmem>>, vector<8x1xf32>
      %c0_29 = arith.constant 0 : index
      %c0_30 = arith.constant 0 : index
      %57 = vector.load %arg6[%c0_29, %c0_30] : memref<8x1xf32, #tpu.memory_space<vmem>>, vector<8x1xf32>
      %58 = math.log %57 : vector<8x1xf32>
      %59 = arith.addf %56, %58 : vector<8x1xf32>
      %c0_31 = arith.constant 0 : index
      %c0_32 = arith.constant 0 : index
      %60 = vector.load %arg7[%c0_31, %c0_32] : memref<8x1xf32, #tpu.memory_space<vmem>>, vector<8x1xf32>
      %61 = arith.subf %59, %60 : vector<8x1xf32>
      %c0_33 = arith.constant 0 : index
      %c0_34 = arith.constant 0 : index
      %62 = vector.load %arg4[%c0_33, %c0_34] : memref<8x1xf32, #tpu.memory_space<vmem>>, vector<8x1xf32>
      tpu.vector_store %arg4[%c0_33, %c0_34], %61 {strides = array<i32>} : memref<8x1xf32, #tpu.memory_space<vmem>>, vector<8x1xf32>,
    } else {
    }
    return
  }
  func.func @transform_0(%arg0: i32, %arg1: i32) -> (i32, i32) {
    %c0_i32 = arith.constant 0 : i32
    return %arg0, %arg1 : i32, i32
  }
  func.func @transform_1(%arg0: i32, %arg1: i32) -> (i32, i32) {
    %c0_i32 = arith.constant 0 : i32
    %c0_i32_0 = arith.constant 0 : i32
    return %arg0, %c0_i32 : i32, i32
  }
  func.func @transform_2(%arg0: i32, %arg1: i32) -> (i32, i32) {
    %c0_i32 = arith.constant 0 : i32
    %c0_i32_0 = arith.constant 0 : i32
    return %arg0, %c0_i32 : i32, i32
  }
}

</mosaic_0001>

<llo_original>
// kernel: tpu_custom_call.1
$region0: #{tpu_custom_call.1}
  #allocation0 [shape = 'u32[]', space=smem, size = 0x4, offset = 0x4, fixed_abs, tag = 'smem constant byte address 0x4 - core index']
  #allocation1 [shape = 'u32[144,128]{1,0:T(1,128)}', space=vmem, size = 0x12000, scoped, tag = 'internal scratch']
  #allocation2 [shape = 'f32[8,1]{1,0:T(8,128)}', space=vmem, size = 0x1000, scoped, tag = 'scratch operand']
  #allocation3 [shape = 'f32[8,1]{1,0:T(8,128)}', space=vmem, size = 0x1000, scoped, tag = 'scratch operand']
  #allocation4 [shape = 'f32[8,1]{1,0:T(8,128)}', space=vmem, size = 0x1000, scoped, tag = 'scratch operand']
  %s0 = inlined_call_operand.hbm [shape: f32[16,256], index: 0, kind: input, shape index: {}]
  %s1 = inlined_call_operand.vmem [shape: s32[16,1], index: 1, kind: input, shape index: {}]
  %s2 = inlined_call_operand.vmem [shape: f32[16,1], index: 2, kind: output, shape index: {}]
  %s3 = sld [smem:[#allocation0]]
  $region53: #{tpu_custom_call.1} parent=0
    _
  %s5 = ssub.s32 1, %s3
  %s6 = scalar_select 0, %s5, %s3
  $region1: #{tpu_custom_call.1} parent=0
    #allocation5 [shape = 'u8[8192]{0}', space=vmem, size = 0x2000, scoped, tag = 'input window, operand 0']
    #allocation6 [shape = 's32[2]{0}', space=sflag, size = 0x8, scoped, tag = 'scoped memory for tpu_custom_call.1']
    %7 = vsyncpa [#allocation6], 0
    %s8 = scalar_lea.sflag [#allocation6], 1
    %9 = vsyncpa %s8, 0
    loop: start=0, step=1, limit=6
    $region2: #{tpu_custom_call.1} parent=1 // loop_pre_header
      _
    $region3: #{tpu_custom_call.1} parent=1 // loop_header
      %s11 = sphi 0, %s15
      %p12 = scmp.ge.s32.totalorder %s11, 6
      %s18 = sphi 0, %s30
      %s19 = sphi 0, %s26
      %s20 = sphi 0, %s18
      %s21 = sphi 0, %s19
      %s22 = sphi 0, %s20
      %s23 = sphi 0, %s21
      %s35 = sphi 0, %s37
      %s38 = sphi 0, %s35
      %s39 = sphi 0, %s38
      %s55 = sphi 0, %s39
      %s61 = sphi 0, %s63
      %s64 = sphi 0, %s61
      %s65 = sphi 0, %s64
      %s81 = sphi 0, %s65
      %s87 = sphi 0, %s89
      %s90 = sphi 0, %s87
      %s91 = sphi 0, %s90
      %s107 = sphi 0, %s91
    $region4: #{tpu_custom_call.1} parent=1 // loop_header_branch
      %14 = sbr.rel (%p12) target = $region8
    $region5: #{tpu_custom_call.1} parent=1 // loop_body
      %s16 = ssub.s32 %s11, 1
      %s17 = ssub.s32 %s11, 2
      %s24 = sadd.s32 1, %s19
      %p25 = scmp.ge.s32.totalorder %s24, 2
      %s26 = scalar_select %p25, 0, %s24
      %s27 = sadd.s32 1, %s18
      %s28 = scalar_select %p25, %s27, %s18
      %p29 = scmp.ge.s32.totalorder %s28, 2
      %s30 = scalar_select %p29, 0, %s28
      %s31 = ssub.s32 %s18, %s30
      %s32 = ssub.s32 %s19, %s26
      %s33 = sor.u32 %s31, %s32
      %p34 = scmp.eq.s32.totalorder %s33, 0
      %s36 = sadd.s32 %s35, 1
      %s37 = scalar_select %p34, %s35, %s36
      %p40 = pneg %p34
      %p41 = scmp.eq.s32.totalorder %s11, 3
      %p42 = por %p40, %p41
      %p43 = scmp.ne.s32.totalorder %s35, %s38
      %p44 = scmp.eq.s32.totalorder %s11, 0
      %p45 = por %p43, %p44
      %p46 = scmp.ne.s32.totalorder %s35, %s38
      %p47 = scmp.eq.s32.totalorder %s16, 3
      %p48 = por %p46, %p47
      %p49 = scmp.ne.s32.totalorder %s38, %s39
      %p50 = scmp.eq.s32.totalorder %s16, 0
      %p51 = por %p49, %p50
      %p52 = scmp.ne.s32.totalorder %s38, %s39
      %p53 = scmp.eq.s32.totalorder %s17, 3
      %p54 = por %p52, %p53
      %p56 = scmp.ne.s32.totalorder %s39, %s55
      %p57 = scmp.eq.s32.totalorder %s17, 0
      %p58 = por %p56, %p57
      %s59 = ssub.s32 %s18, %s30
      %p60 = scmp.eq.s32.totalorder %s59, 0
      %s62 = sadd.s32 %s61, 1
      %s63 = scalar_select %p60, %s61, %s62
      %p66 = pneg %p60
      %p67 = scmp.eq.s32.totalorder %s11, 3
      %p68 = por %p66, %p67
      %p69 = scmp.ne.s32.totalorder %s61, %s64
      %p70 = scmp.eq.s32.totalorder %s11, 0
      %p71 = por %p69, %p70
      %p72 = scmp.ne.s32.totalorder %s61, %s64
      %p73 = scmp.eq.s32.totalorder %s16, 3
      %p74 = por %p72, %p73
      %p75 = scmp.ne.s32.totalorder %s64, %s65
      %p76 = scmp.eq.s32.totalorder %s16, 0
      %p77 = por %p75, %p76
      %p78 = scmp.ne.s32.totalorder %s64, %s65
      %p79 = scmp.eq.s32.totalorder %s17, 3
      %p80 = por %p78, %p79
      %p82 = scmp.ne.s32.totalorder %s65, %s81
      %p83 = scmp.eq.s32.totalorder %s17, 0
      %p84 = por %p82, %p83
      %s85 = ssub.s32 %s18, %s30
      %p86 = scmp.eq.s32.totalorder %s85, 0
      %s88 = sadd.s32 %s87, 1
      %s89 = scalar_select %p86, %s87, %s88
      %p92 = pneg %p86
      %p93 = scmp.eq.s32.totalorder %s11, 3
      %p94 = por %p92, %p93
      %p95 = scmp.ne.s32.totalorder %s87, %s90
      %p96 = scmp.eq.s32.totalorder %s11, 0
      %p97 = por %p95, %p96
      %p98 = scmp.ne.s32.totalorder %s87, %s90
      %p99 = scmp.eq.s32.totalorder %s16, 3
      %p100 = por %p98, %p99
      %p101 = scmp.ne.s32.totalorder %s90, %s91
      %p102 = scmp.eq.s32.totalorder %s16, 0
      %p103 = por %p101, %p102
      %p104 = scmp.ne.s32.totalorder %s90, %s91
      %p105 = scmp.eq.s32.totalorder %s17, 3
      %p106 = por %p104, %p105
      %p108 = scmp.ne.s32.totalorder %s91, %s107
      %p109 = scmp.eq.s32.totalorder %s17, 0
      %p110 = por %p108, %p109
      %p111 = scmp.le.s32.totalorder 1, %s11
      %p112 = scmp.lt.s32.totalorder %s11, 5
      %p113 = pnand %p111, %p112
      %p114 = pneg %p113
      // Predicated region
      $region9: #{tpu_custom_call.1} parent=5 // pred_check
        _
      $region10: #{tpu_custom_call.1} parent=5 // pred_check_branch
        %116 = sbr.rel (%p113) target = $region12
      $region11: #{tpu_custom_call.1} parent=5 // pred_region
        %s117 = ssub.s32 %s11, 1
      $region12: #{tpu_custom_call.1} parent=5 // pred_fallthru
        _
      %p118 = scmp.lt.s32.totalorder %s11, 4
      // Predicated region
      $region13: #{tpu_custom_call.1} parent=5 // pred_check
        %p119 = pneg %p118
      $region14: #{tpu_custom_call.1} parent=5 // pred_check_branch
        %121 = sbr.rel (%p119) target = $region16
      $region15: #{tpu_custom_call.1} parent=5 // pred_region
        // Predicated region
        $region17: #{tpu_custom_call.1} parent=15 // pred_check
          %p122 = pneg %p45
        $region18: #{tpu_custom_call.1} parent=15 // pred_check_branch
          %124 = sbr.rel (%p122) target = $region20
        $region19: #{tpu_custom_call.1} parent=15 // pred_region
          %s125 = sand.u32 %s35, 1
          %s126 = scalar_lea.sflag [#allocation6], %s125
          %s127 = sand.u32 %s35, 1
          %s128 = smul.addr %s127, 8
          %s129 = scalar_lea.vmem [#allocation5], %s128
          %s131 = ssub.s32 128, 128
          %132 = vsyncadd %s126, %s131
          %s133 = smul.addr %s18, 2
          %s134 = sadd.s32 %s19, %s133
          %s135 = smul.addr %s134, 128
          %s136 = scalar_lea.hbm %s0, %s135
          %s138 = sshll.u32 %s129, 4
          %s139 = int_to_ptr.vmem [resolvable:$true] %s138
          %141 = dma.hbm_to_vmem [thread:$0]  %s136, 128, %s139, %s126
        $region20: #{tpu_custom_call.1} parent=15 // pred_fallthru
          _
        // Predicated region
        $region21: #{tpu_custom_call.1} parent=15 // pred_check
          %p142 = pneg %p71
        $region22: #{tpu_custom_call.1} parent=15 // pred_check_branch
          %144 = sbr.rel (%p142) target = $region24
        $region23: #{tpu_custom_call.1} parent=15 // pred_region
          %p145 = scmp.lt.s32.totalorder %s18, 1
          %s146 = scalar_select %p145, %s18, 1
          %s147 = smul.addr %s146, 8
          %s148 = scalar_lea.vmem %s1, %s147
        $region24: #{tpu_custom_call.1} parent=15 // pred_fallthru
          _
      $region16: #{tpu_custom_call.1} parent=5 // pred_fallthru
        _
      %p149 = scmp.le.s32.totalorder 1, %s11
      %p150 = scmp.lt.s32.totalorder %s11, 5
      %p151 = pnand %p149, %p150
      %p152 = pneg %p151
      // Predicated region
      $region25: #{tpu_custom_call.1} parent=5 // pred_check
        _
      $region26: #{tpu_custom_call.1} parent=5 // pred_check_branch
        %154 = sbr.rel (%p151) target = $region28
      $region27: #{tpu_custom_call.1} parent=5 // pred_region
        %s155 = ssub.s32 %s11, 1
        %s156 = sand.u32 %s38, 1
        %s157 = scalar_lea.sflag [#allocation6], %s156
        %s158 = sand.u32 %s38, 1
        %s159 = smul.addr %s158, 8
        %s160 = scalar_lea.vmem [#allocation5], %s159
        // Predicated region
        $region29: #{tpu_custom_call.1} parent=27 // pred_check
          %p161 = pneg %p51
        $region30: #{tpu_custom_call.1} parent=27 // pred_check_branch
          %163 = sbr.rel (%p161) target = $region32
        $region31: #{tpu_custom_call.1} parent=27 // pred_region
          %164 = dma.done %s157, 128
        $region32: #{tpu_custom_call.1} parent=27 // pred_fallthru
          _
        %s165 = sand.u32 %s38, 1
        %s166 = scalar_lea.sflag [#allocation6], %s165
        %s167 = sand.u32 %s38, 1
        %s168 = smul.addr %s167, 8
        %s169 = scalar_lea.vmem [#allocation5], %s168
        %p170 = pneg %p51
        %p171 = pneg %p48
        %p172 = scmp.lt.s32.totalorder %s20, 1
        %s173 = scalar_select %p172, %s20, 1
        %s174 = smul.addr %s173, 8
        %s175 = scalar_lea.vmem %s1, %s174
        %p176 = pneg %p77
        %p177 = pneg %p74
        %p178 = pneg %p103
        %p179 = pneg %p100
        %p180 = scmp.lt.s32.totalorder %s20, 1
        %s181 = scalar_select %p180, %s20, 1
        %s182 = smul.addr %s181, 8
        %s183 = scalar_lea.vmem %s2, %s182
        %p184 = scmp.lt.s32.totalorder %s20, 1
        %s185 = scalar_select %p184, %s20, 1
        %s186 = smul.addr %s185, 8
        %s187 = scalar_lea.vmem %s1, %s186
        %p188 = scmp.lt.s32.totalorder %s20, 1
        %s189 = scalar_select %p188, %s20, 1
        %s190 = smul.addr %s189, 8
        %s191 = scalar_lea.vmem %s2, %s190
        %p192 = scmp.eq.s32.totalorder %s21, 0
        // Predicated region
        $region33: #{tpu_custom_call.1} parent=27 // pred_check
          %p193 = pneg %p192
        $region34: #{tpu_custom_call.1} parent=27 // pred_check_branch
          %195 = sbr.rel (%p193) target = $region36
        $region35: #{tpu_custom_call.1} parent=27 // pred_region
          %vm196 = vcmask 7168
          %197 = vst.msk [vmem:[#allocation2] sm:$0xff] %vm196, -inf
          %198 = vst.msk [vmem:[#allocation3] sm:$0xff] %vm196, 0.0
          %199 = vst.msk [vmem:[#allocation4] sm:$0xff] %vm196, 0.0
        $region36: #{tpu_custom_call.1} parent=27 // pred_fallthru
          _
        %v200 = vld [vmem:[%s160] sm:$0xff]
        %v201 = vld [vmem:[%s187] sm:$0xff]
        %v202 = vmax.f32 %v200, -0.99
        %v203 = vmin.f32 %v202, 0.99
        %v204 = vmul.f32 %v203, %v203
        %v205 = vsub.f32 1.0, %v204
        %v206 = vrsqrt.pop %v205
        %v207 = vmul.f32 %v205, %v206
        %vm208 = vcmp.eq.f32.partialorder %v205, inf
        %v209 = vsel %vm208, %v205, %v207
        %vm210 = vcmp.eq.f32.partialorder %v205, 0.0
        %v211 = vand.u32 %v205, 2147483648
        %v212 = vsel %vm210, %v211, %v209
        %v213 = vsub.f32 1.0, %v212
        %s214 = smul.u32 %s21, 128
        %v215 = vlaneseq
        %v216 = vand.u32 %v215, 127
        %v217 = vstv %s214
        %v218 = vadd.s32 %v217, %v216
        %219 = vset.pattern.permute.xlu0 0
        %220 = vperm.xlu0 %219, %v201
        %v221 = vpop.permute.xlu0 %220
        %vm222 = vcmp.eq.s32.totalorder %v218, %v221
        %v223 = vsub.f32 %v200, 0.3
        %v224 = vsel %vm222, %v223, %v213
        %v225 = vmul.f32 %v224, 30.0
        %vm226 = vcmp.lt.s32.totalorder %v218, 200
        %v227 = vsel %vm226, %v225, -inf
        %v228 = vld [vmem:[#allocation2] sm:$0xff]
        %229 = vmax.xlane.f32.xlu0 %v227
        %v230 = vpop.xlane.xlu0 %229
        %v231 = vmax.f32 %v228, %v230
        %v232 = vsub.f32 %v228, %v231
        %v233 = vmul.f32 %v232, 1.442695
        %v234 = vpow.pop %v233
        %v235 = vld [vmem:[#allocation3] sm:$0xff]
        %v236 = vmul.f32 %v234, %v235
        %238 = vset.pattern.permute.xlu0 0
        %239 = vperm.xlu0 %238, %v231
        %v240 = vpop.permute.xlu0 %239
        %v242 = vsub.f32 %v227, %v240
        %v243 = vmul.f32 %v242, 1.442695
        %v244 = vpow.pop %v243
        %245 = vadd.xlane.f32.xlu0 %v244
        %v246 = vpop.xlane.xlu0 %245
        %v247 = vadd.f32 %v236, %v246
        %vm248 = vcmask 7168
        %249 = vst.msk [vmem:[#allocation3] sm:$0xff] %vm248, %v247
        %250 = vst.msk [vmem:[#allocation2] sm:$0xff] %vm248, %v231
        %v251 = vld [vmem:[#allocation4] sm:$0xff]
        %v252 = vsel %vm222, %v227, 0.0
        %253 = vadd.xlane.f32.xlu0 %v252
        %v254 = vpop.xlane.xlu0 %253
        %v255 = vadd.f32 %v251, %v254
        %256 = vst.msk [vmem:[#allocation4] sm:$0xff] %vm248, %v255
        %p257 = scmp.eq.s32.totalorder %s21, 1
        // Predicated region
        $region37: #{tpu_custom_call.1} parent=27 // pred_check
          %p258 = pneg %p257
        $region38: #{tpu_custom_call.1} parent=27 // pred_check_branch
          %260 = sbr.rel (%p258) target = $region40
        $region39: #{tpu_custom_call.1} parent=27 // pred_region
          %v261 = vld [vmem:[#allocation2] sm:$0xff]
          %v262 = vld [vmem:[#allocation3] sm:$0xff]
          %v263 = vlog2.pop %v262
          %v264 = vmul.f32 %v263, 0.6931472
          %v265 = vadd.f32 %v261, %v264
          %v266 = vld [vmem:[#allocation4] sm:$0xff]
          %v267 = vsub.f32 %v265, %v266
          %268 = vst.msk [vmem:[%s191] sm:$0xff] %vm248, %v267
        $region40: #{tpu_custom_call.1} parent=27 // pred_fallthru
          _
        %p269 = scmp.lt.s32.totalorder %s20, 1
        %s270 = scalar_select %p269, %s20, 1
        %s271 = smul.addr %s270, 8
        %s272 = scalar_lea.vmem %s2, %s271
        // Predicated region
        $region41: #{tpu_custom_call.1} parent=27 // pred_check
          %p273 = pneg %p100
        $region42: #{tpu_custom_call.1} parent=27 // pred_check_branch
          %275 = sbr.rel (%p273) target = $region44
        $region43: #{tpu_custom_call.1} parent=27 // pred_region
          _
        $region44: #{tpu_custom_call.1} parent=27 // pred_fallthru
          _
      $region28: #{tpu_custom_call.1} parent=5 // pred_fallthru
        _
      %p276 = scmp.le.s32.totalorder 2, %s11
      // Predicated region
      $region45: #{tpu_custom_call.1} parent=5 // pred_check
        %p277 = pneg %p276
      $region46: #{tpu_custom_call.1} parent=5 // pred_check_branch
        %279 = sbr.rel (%p277) target = $region48
      $region47: #{tpu_custom_call.1} parent=5 // pred_region
        %s280 = ssub.s32 %s11, 2
        // Predicated region
        $region49: #{tpu_custom_call.1} parent=47 // pred_check
          %p281 = pneg %p106
        $region50: #{tpu_custom_call.1} parent=47 // pred_check_branch
          %283 = sbr.rel (%p281) target = $region52
        $region51: #{tpu_custom_call.1} parent=47 // pred_region
          %p284 = scmp.lt.s32.totalorder %s22, 1
          %s285 = scalar_select %p284, %s22, 1
          %s286 = smul.addr %s285, 8
          %s287 = scalar_lea.vmem %s2, %s286
        $region52: #{tpu_custom_call.1} parent=47 // pred_fallthru
          _
      $region48: #{tpu_custom_call.1} parent=5 // pred_fallthru
        _
    $region6: #{tpu_custom_call.1} parent=1 // loop_footer
      %s15 = sadd.s32 1, %s11
    $region7: #{tpu_custom_call.1} parent=1 // loop_footer_branch
      %10 = sbr.rel target = $region3
    $region8: #{tpu_custom_call.1} parent=1 // loop_exit
      _
    %288 = vsyncpa [#allocation6], 1
    %s289 = scalar_lea.sflag [#allocation6], 1
    %290 = vsyncpa %s289, 1

</llo_original>
